<compile_context>
chip_gen: v7x
topology: tpu7x:2x2x1
jax: 0.10.0
libtpu: 0.0.40
codegen_flags: <defaults>
</compile_context>

<pallas_src>
import functools

import jax
import jax.numpy as jnp
from jax.experimental import pallas as pl
from jax.experimental.pallas import tpu as pltpu


def _embedding_gather_kernel(ids_ref, emb_hbm, out_ref, sem, *,
                             padding_idx: int, tm: int, vocab: int):
    """One grid step gathers TM embedding rows into the (TM, D) output tile.

    ids_ref : SMEM (N_pad,) int32   -- scalar-prefetched token ids
    emb_hbm : HBM  (V, D)  float32  -- full embedding table (never in VMEM)
    out_ref : VMEM (TM, D) float32  -- output tile for this grid step
    sem     : (TM,) DMA semaphores  -- one per gathered row
    """
    t = pl.program_id(0)
    base = t * tm
    d = out_ref.shape[1]

    # Phase 1: issue all TM row DMAs (HBM row -> output-tile row).  tm is a
    # small static constant, so this is fully unrolled at trace time and the
    # DMA engine sees every copy up front (copies overlap each other).
    for j in range(tm):
        tok = ids_ref[base + j]
        safe = jnp.minimum(jnp.maximum(tok, 0), vocab - 1)
        pltpu.make_async_copy(
            emb_hbm.at[pl.ds(safe, 1), :],
            out_ref.at[pl.ds(j, 1), :],
            sem.at[j],
        ).start()

    # Phase 2: wait on each row, then apply the padding mask in place
    # (zero the row iff the token is padding_idx) -- fused, no extra
    # broadcast/multiply over the whole tile.
    for j in range(tm):
        tok = ids_ref[base + j]
        safe = jnp.minimum(jnp.maximum(tok, 0), vocab - 1)
        pltpu.make_async_copy(
            emb_hbm.at[pl.ds(safe, 1), :],
            out_ref.at[pl.ds(j, 1), :],
            sem.at[j],
        ).wait()

        @pl.when(tok == padding_idx)
        def _zero_row(j=j):
            out_ref[pl.ds(j, 1), :] = jnp.zeros((1, d), out_ref.dtype)


def embedding_forward(input_ids: jax.Array,
                      embedding_matrix: jax.Array,
                      padding_idx: int,
                      *,
                      tm: int = 8) -> jax.Array:
    """input_ids: (B, S) int32, embedding_matrix: (V, D) f32 -> (B, S, D) f32."""
    b, s = input_ids.shape
    v, d = embedding_matrix.shape
    n = b * s
    n_pad = pl.cdiv(n, tm) * tm

    ids_flat = input_ids.reshape(n).astype(jnp.int32)
    if n_pad != n:
        # Pad the token axis with padding_idx tokens; they come out zero and
        # are sliced off below.
        pad = jnp.full((n_pad - n,), padding_idx, dtype=jnp.int32)
        ids_flat = jnp.concatenate([ids_flat, pad])

    kernel = functools.partial(
        _embedding_gather_kernel, padding_idx=int(padding_idx), tm=tm, vocab=v)

    out_flat = pl.pallas_call(
        kernel,
        out_shape=jax.ShapeDtypeStruct((n_pad, d), embedding_matrix.dtype),
        grid_spec=pltpu.PrefetchScalarGridSpec(
            num_scalar_prefetch=1,                 # ids -> SMEM
            grid=(n_pad // tm,),                   # one step per TM-token tile
            in_specs=[pl.BlockSpec(memory_space=pl.ANY)],   # table stays in HBM
            out_specs=pl.BlockSpec((tm, d), lambda t, ids: (t, 0)),
            scratch_shapes=[pltpu.SemaphoreType.DMA((tm,))],
        ),
        compiler_params=pltpu.CompilerParams(
            dimension_semantics=("parallel",),     # shard token tiles over TCs
        ),
    )(ids_flat, embedding_matrix)

    return out_flat[:n].reshape(b, s, d)


if __name__ == "__main__":
    # Small, deterministic setup (D chosen as a lane-dense multiple of 128).
    num_embeddings = 64
    embedding_dim = 128
    padding_idx = 0
    batch, seq = 2, 8

    key = jax.random.PRNGKey(0)
    k_emb, k_ids = jax.random.split(key)

    # torch.randn-style init for the embedding matrix (deterministic here).
    embedding_matrix = jax.random.normal(
        k_emb, (num_embeddings, embedding_dim), dtype=jnp.float32)

    input_ids = jax.random.randint(
        k_ids, (batch, seq), minval=0, maxval=num_embeddings, dtype=jnp.int32)
    # Force a couple of padding tokens so the mask path is exercised.
    input_ids = input_ids.at[0, 0].set(padding_idx)
    input_ids = input_ids.at[1, 3].set(padding_idx)

    out = embedding_forward(input_ids, embedding_matrix, padding_idx)
    out = jax.block_until_ready(out)

    # Reference (plain JAX) -- gather is a pure copy, so match should be exact.
    mask = (input_ids != padding_idx)[..., None].astype(jnp.float32)
    ref = embedding_matrix[input_ids] * mask
    assert out.shape == (batch, seq, embedding_dim)
    assert jnp.allclose(out, ref, atol=1e-6), "mismatch vs reference"

    # TODO(synk): the register_hook gradient-zeroing at padding_idx is a
    # training-time (backward) artifact with no forward-pass equivalent.
    print("KERNEL_OK")
</pallas_src>

<mosaic_0001>
module attributes {stable_mosaic.version = 11 : i64} {
  func.func @_embedding_gather_kernel(%arg0: i32, %arg1: memref<16xi32, #tpu.memory_space<smem>>, %arg2: memref<64x128xf32, #tpu.memory_space<any>>, %arg3: memref<8x128xf32, #tpu.memory_space<vmem>>, %arg4: memref<8x!tpu.dma_semaphore, #tpu.memory_space<semaphore_mem>>) attributes {dimension_semantics = [#tpu.dimension_semantics<parallel>], iteration_bounds = array<i64: 2>, scalar_prefetch = 1 : i64, scratch_operands = 1 : i64, tpu.core_type = #tpu.core_type<tc>, window_params = [{}, {transform_indices = @transform_1, window_bounds = array<i64: 8, 128>}]} {
    %c8_i32 = arith.constant 8 : i32
    %0 = arith.muli %arg0, %c8_i32 : i32
    %c0_i32 = arith.constant 0 : i32
    %1 = arith.addi %0, %c0_i32 : i32
    %2 = arith.index_cast %1 : i32 to index
    %3 = memref.load %arg1[%2] : memref<16xi32, #tpu.memory_space<smem>>
    %c0_i32_0 = arith.constant 0 : i32
    %4 = arith.maxsi %3, %c0_i32_0 : i32
    %c63_i32 = arith.constant 63 : i32
    %5 = arith.minsi %4, %c63_i32 : i32
    %c0_i32_1 = arith.constant 0 : i32
    %c0_i32_2 = arith.constant 0 : i32
    %6 = tpu.memref_slice %arg2[%5, %c0_i32_2] : memref<64x128xf32, #tpu.memory_space<any>> -> memref<1x128xf32, #tpu.memory_space<any>>
    %c0_i32_3 = arith.constant 0 : i32
    %c0_i32_4 = arith.constant 0 : i32
    %7 = tpu.memref_slice %arg3[%c0_i32_3, %c0_i32_4] : memref<8x128xf32, #tpu.memory_space<vmem>> -> memref<1x128xf32, #tpu.memory_space<vmem>>
    %8 = tpu.memref_slice %arg4[%c0_i32_1] : memref<8x!tpu.dma_semaphore, #tpu.memory_space<semaphore_mem>> -> memref<1x!tpu.dma_semaphore, #tpu.memory_space<semaphore_mem>>
    %9 = tpu.memref_squeeze %8 : memref<1x!tpu.dma_semaphore, #tpu.memory_space<semaphore_mem>> -> memref<!tpu.dma_semaphore, #tpu.memory_space<semaphore_mem>>
    tpu.enqueue_dma source(%6 : memref<1x128xf32, #tpu.memory_space<any>>) target(%7 : memref<1x128xf32, #tpu.memory_space<vmem>>) target_semaphore(%9 : memref<!tpu.dma_semaphore, #tpu.memory_space<semaphore_mem>>)
    %c1_i32 = arith.constant 1 : i32
    %10 = arith.addi %0, %c1_i32 : i32
    %11 = arith.index_cast %10 : i32 to index
    %12 = memref.load %arg1[%11] : memref<16xi32, #tpu.memory_space<smem>>
    %c0_i32_5 = arith.constant 0 : i32
    %13 = arith.maxsi %12, %c0_i32_5 : i32
    %c63_i32_6 = arith.constant 63 : i32
    %14 = arith.minsi %13, %c63_i32_6 : i32
    %c1_i32_7 = arith.constant 1 : i32
    %c0_i32_8 = arith.constant 0 : i32
    %15 = tpu.memref_slice %arg2[%14, %c0_i32_8] : memref<64x128xf32, #tpu.memory_space<any>> -> memref<1x128xf32, #tpu.memory_space<any>>
    %c1_i32_9 = arith.constant 1 : i32
    %c0_i32_10 = arith.constant 0 : i32
    %16 = tpu.memref_slice %arg3[%c1_i32_9, %c0_i32_10] : memref<8x128xf32, #tpu.memory_space<vmem>> -> memref<1x128xf32, #tpu.memory_space<vmem>>
    %17 = tpu.memref_slice %arg4[%c1_i32_7] : memref<8x!tpu.dma_semaphore, #tpu.memory_space<semaphore_mem>> -> memref<1x!tpu.dma_semaphore, #tpu.memory_space<semaphore_mem>>
    %18 = tpu.memref_squeeze %17 : memref<1x!tpu.dma_semaphore, #tpu.memory_space<semaphore_mem>> -> memref<!tpu.dma_semaphore, #tpu.memory_space<semaphore_mem>>
    tpu.enqueue_dma source(%15 : memref<1x128xf32, #tpu.memory_space<any>>) target(%16 : memref<1x128xf32, #tpu.memory_space<vmem>>) target_semaphore(%18 : memref<!tpu.dma_semaphore, #tpu.memory_space<semaphore_mem>>)
    %c2_i32 = arith.constant 2 : i32
    %19 = arith.addi %0, %c2_i32 : i32
    %20 = arith.index_cast %19 : i32 to index
    %21 = memref.load %arg1[%20] : memref<16xi32, #tpu.memory_space<smem>>
    %c0_i32_11 = arith.constant 0 : i32
    %22 = arith.maxsi %21, %c0_i32_11 : i32
    %c63_i32_12 = arith.constant 63 : i32
    %23 = arith.minsi %22, %c63_i32_12 : i32
    %c2_i32_13 = arith.constant 2 : i32
    %c0_i32_14 = arith.constant 0 : i32
    %24 = tpu.memref_slice %arg2[%23, %c0_i32_14] : memref<64x128xf32, #tpu.memory_space<any>> -> memref<1x128xf32, #tpu.memory_space<any>>
    %c2_i32_15 = arith.constant 2 : i32
    %c0_i32_16 = arith.constant 0 : i32
    %25 = tpu.memref_slice %arg3[%c2_i32_15, %c0_i32_16] : memref<8x128xf32, #tpu.memory_space<vmem>> -> memref<1x128xf32, #tpu.memory_space<vmem>>
    %26 = tpu.memref_slice %arg4[%c2_i32_13] : memref<8x!tpu.dma_semaphore, #tpu.memory_space<semaphore_mem>> -> memref<1x!tpu.dma_semaphore, #tpu.memory_space<semaphore_mem>>
    %27 = tpu.memref_squeeze %26 : memref<1x!tpu.dma_semaphore, #tpu.memory_space<semaphore_mem>> -> memref<!tpu.dma_semaphore, #tpu.memory_space<semaphore_mem>>
    tpu.enqueue_dma source(%24 : memref<1x128xf32, #tpu.memory_space<any>>) target(%25 : memref<1x128xf32, #tpu.memory_space<vmem>>) target_semaphore(%27 : memref<!tpu.dma_semaphore, #tpu.memory_space<semaphore_mem>>)
    %c3_i32 = arith.constant 3 : i32
    %28 = arith.addi %0, %c3_i32 : i32
    %29 = arith.index_cast %28 : i32 to index
    %30 = memref.load %arg1[%29] : memref<16xi32, #tpu.memory_space<smem>>
    %c0_i32_17 = arith.constant 0 : i32
    %31 = arith.maxsi %30, %c0_i32_17 : i32
    %c63_i32_18 = arith.constant 63 : i32
    %32 = arith.minsi %31, %c63_i32_18 : i32
    %c3_i32_19 = arith.constant 3 : i32
    %c0_i32_20 = arith.constant 0 : i32
    %33 = tpu.memref_slice %arg2[%32, %c0_i32_20] : memref<64x128xf32, #tpu.memory_space<any>> -> memref<1x128xf32, #tpu.memory_space<any>>
    %c3_i32_21 = arith.constant 3 : i32
    %c0_i32_22 = arith.constant 0 : i32
    %34 = tpu.memref_slice %arg3[%c3_i32_21, %c0_i32_22] : memref<8x128xf32, #tpu.memory_space<vmem>> -> memref<1x128xf32, #tpu.memory_space<vmem>>
    %35 = tpu.memref_slice %arg4[%c3_i32_19] : memref<8x!tpu.dma_semaphore, #tpu.memory_space<semaphore_mem>> -> memref<1x!tpu.dma_semaphore, #tpu.memory_space<semaphore_mem>>
    %36 = tpu.memref_squeeze %35 : memref<1x!tpu.dma_semaphore, #tpu.memory_space<semaphore_mem>> -> memref<!tpu.dma_semaphore, #tpu.memory_space<semaphore_mem>>
    tpu.enqueue_dma source(%33 : memref<1x128xf32, #tpu.memory_space<any>>) target(%34 : memref<1x128xf32, #tpu.memory_space<vmem>>) target_semaphore(%36 : memref<!tpu.dma_semaphore, #tpu.memory_space<semaphore_mem>>)
    %c4_i32 = arith.constant 4 : i32
    %37 = arith.addi %0, %c4_i32 : i32
    %38 = arith.index_cast %37 : i32 to index
    %39 = memref.load %arg1[%38] : memref<16xi32, #tpu.memory_space<smem>>
    %c0_i32_23 = arith.constant 0 : i32
    %40 = arith.maxsi %39, %c0_i32_23 : i32
    %c63_i32_24 = arith.constant 63 : i32
    %41 = arith.minsi %40, %c63_i32_24 : i32
    %c4_i32_25 = arith.constant 4 : i32
    %c0_i32_26 = arith.constant 0 : i32
    %42 = tpu.memref_slice %arg2[%41, %c0_i32_26] : memref<64x128xf32, #tpu.memory_space<any>> -> memref<1x128xf32, #tpu.memory_space<any>>
    %c4_i32_27 = arith.constant 4 : i32
    %c0_i32_28 = arith.constant 0 : i32
    %43 = tpu.memref_slice %arg3[%c4_i32_27, %c0_i32_28] : memref<8x128xf32, #tpu.memory_space<vmem>> -> memref<1x128xf32, #tpu.memory_space<vmem>>
    %44 = tpu.memref_slice %arg4[%c4_i32_25] : memref<8x!tpu.dma_semaphore, #tpu.memory_space<semaphore_mem>> -> memref<1x!tpu.dma_semaphore, #tpu.memory_space<semaphore_mem>>
    %45 = tpu.memref_squeeze %44 : memref<1x!tpu.dma_semaphore, #tpu.memory_space<semaphore_mem>> -> memref<!tpu.dma_semaphore, #tpu.memory_space<semaphore_mem>>
    tpu.enqueue_dma source(%42 : memref<1x128xf32, #tpu.memory_space<any>>) target(%43 : memref<1x128xf32, #tpu.memory_space<vmem>>) target_semaphore(%45 : memref<!tpu.dma_semaphore, #tpu.memory_space<semaphore_mem>>)
    %c5_i32 = arith.constant 5 : i32
    %46 = arith.addi %0, %c5_i32 : i32
    %47 = arith.index_cast %46 : i32 to index
    %48 = memref.load %arg1[%47] : memref<16xi32, #tpu.memory_space<smem>>
    %c0_i32_29 = arith.constant 0 : i32
    %49 = arith.maxsi %48, %c0_i32_29 : i32
    %c63_i32_30 = arith.constant 63 : i32
    %50 = arith.minsi %49, %c63_i32_30 : i32
    %c5_i32_31 = arith.constant 5 : i32
    %c0_i32_32 = arith.constant 0 : i32
    %51 = tpu.memref_slice %arg2[%50, %c0_i32_32] : memref<64x128xf32, #tpu.memory_space<any>> -> memref<1x128xf32, #tpu.memory_space<any>>
    %c5_i32_33 = arith.constant 5 : i32
    %c0_i32_34 = arith.constant 0 : i32
    %52 = tpu.memref_slice %arg3[%c5_i32_33, %c0_i32_34] : memref<8x128xf32, #tpu.memory_space<vmem>> -> memref<1x128xf32, #tpu.memory_space<vmem>>
    %53 = tpu.memref_slice %arg4[%c5_i32_31] : memref<8x!tpu.dma_semaphore, #tpu.memory_space<semaphore_mem>> -> memref<1x!tpu.dma_semaphore, #tpu.memory_space<semaphore_mem>>
    %54 = tpu.memref_squeeze %53 : memref<1x!tpu.dma_semaphore, #tpu.memory_space<semaphore_mem>> -> memref<!tpu.dma_semaphore, #tpu.memory_space<semaphore_mem>>
    tpu.enqueue_dma source(%51 : memref<1x128xf32, #tpu.memory_space<any>>) target(%52 : memref<1x128xf32, #tpu.memory_space<vmem>>) target_semaphore(%54 : memref<!tpu.dma_semaphore, #tpu.memory_space<semaphore_mem>>)
    %c6_i32 = arith.constant 6 : i32
    %55 = arith.addi %0, %c6_i32 : i32
    %56 = arith.index_cast %55 : i32 to index
    %57 = memref.load %arg1[%56] : memref<16xi32, #tpu.memory_space<smem>>
    %c0_i32_35 = arith.constant 0 : i32
    %58 = arith.maxsi %57, %c0_i32_35 : i32
    %c63_i32_36 = arith.constant 63 : i32
    %59 = arith.minsi %58, %c63_i32_36 : i32
    %c6_i32_37 = arith.constant 6 : i32
    %c0_i32_38 = arith.constant 0 : i32
    %60 = tpu.memref_slice %arg2[%59, %c0_i32_38] : memref<64x128xf32, #tpu.memory_space<any>> -> memref<1x128xf32, #tpu.memory_space<any>>
    %c6_i32_39 = arith.constant 6 : i32
    %c0_i32_40 = arith.constant 0 : i32
    %61 = tpu.memref_slice %arg3[%c6_i32_39, %c0_i32_40] : memref<8x128xf32, #tpu.memory_space<vmem>> -> memref<1x128xf32, #tpu.memory_space<vmem>>
    %62 = tpu.memref_slice %arg4[%c6_i32_37] : memref<8x!tpu.dma_semaphore, #tpu.memory_space<semaphore_mem>> -> memref<1x!tpu.dma_semaphore, #tpu.memory_space<semaphore_mem>>
    %63 = tpu.memref_squeeze %62 : memref<1x!tpu.dma_semaphore, #tpu.memory_space<semaphore_mem>> -> memref<!tpu.dma_semaphore, #tpu.memory_space<semaphore_mem>>
    tpu.enqueue_dma source(%60 : memref<1x128xf32, #tpu.memory_space<any>>) target(%61 : memref<1x128xf32, #tpu.memory_space<vmem>>) target_semaphore(%63 : memref<!tpu.dma_semaphore, #tpu.memory_space<semaphore_mem>>)
    %c7_i32 = arith.constant 7 : i32
    %64 = arith.addi %0, %c7_i32 : i32
    %65 = arith.index_cast %64 : i32 to index
    %66 = memref.load %arg1[%65] : memref<16xi32, #tpu.memory_space<smem>>
    %c0_i32_41 = arith.constant 0 : i32
    %67 = arith.maxsi %66, %c0_i32_41 : i32
    %c63_i32_42 = arith.constant 63 : i32
    %68 = arith.minsi %67, %c63_i32_42 : i32
    %c7_i32_43 = arith.constant 7 : i32
    %c0_i32_44 = arith.constant 0 : i32
    %69 = tpu.memref_slice %arg2[%68, %c0_i32_44] : memref<64x128xf32, #tpu.memory_space<any>> -> memref<1x128xf32, #tpu.memory_space<any>>
    %c7_i32_45 = arith.constant 7 : i32
    %c0_i32_46 = arith.constant 0 : i32
    %70 = tpu.memref_slice %arg3[%c7_i32_45, %c0_i32_46] : memref<8x128xf32, #tpu.memory_space<vmem>> -> memref<1x128xf32, #tpu.memory_space<vmem>>
    %71 = tpu.memref_slice %arg4[%c7_i32_43] : memref<8x!tpu.dma_semaphore, #tpu.memory_space<semaphore_mem>> -> memref<1x!tpu.dma_semaphore, #tpu.memory_space<semaphore_mem>>
    %72 = tpu.memref_squeeze %71 : memref<1x!tpu.dma_semaphore, #tpu.memory_space<semaphore_mem>> -> memref<!tpu.dma_semaphore, #tpu.memory_space<semaphore_mem>>
    tpu.enqueue_dma source(%69 : memref<1x128xf32, #tpu.memory_space<any>>) target(%70 : memref<1x128xf32, #tpu.memory_space<vmem>>) target_semaphore(%72 : memref<!tpu.dma_semaphore, #tpu.memory_space<semaphore_mem>>)
    %c0_i32_47 = arith.constant 0 : i32
    %73 = arith.addi %0, %c0_i32_47 : i32
    %74 = arith.index_cast %73 : i32 to index
    %75 = memref.load %arg1[%74] : memref<16xi32, #tpu.memory_space<smem>>
    %c0_i32_48 = arith.constant 0 : i32
    %76 = arith.maxsi %75, %c0_i32_48 : i32
    %c63_i32_49 = arith.constant 63 : i32
    %77 = arith.minsi %76, %c63_i32_49 : i32
    %c0_i32_50 = arith.constant 0 : i32
    %c0_i32_51 = arith.constant 0 : i32
    %78 = tpu.memref_slice %arg2[%77, %c0_i32_51] : memref<64x128xf32, #tpu.memory_space<any>> -> memref<1x128xf32, #tpu.memory_space<any>>
    %c0_i32_52 = arith.constant 0 : i32
    %c0_i32_53 = arith.constant 0 : i32
    %79 = tpu.memref_slice %arg3[%c0_i32_52, %c0_i32_53] : memref<8x128xf32, #tpu.memory_space<vmem>> -> memref<1x128xf32, #tpu.memory_space<vmem>>
    %80 = tpu.memref_slice %arg4[%c0_i32_50] : memref<8x!tpu.dma_semaphore, #tpu.memory_space<semaphore_mem>> -> memref<1x!tpu.dma_semaphore, #tpu.memory_space<semaphore_mem>>
    %81 = tpu.memref_squeeze %80 : memref<1x!tpu.dma_semaphore, #tpu.memory_space<semaphore_mem>> -> memref<!tpu.dma_semaphore, #tpu.memory_space<semaphore_mem>>
    tpu.wait_dma2 semaphore(%81 : memref<!tpu.dma_semaphore, #tpu.memory_space<semaphore_mem>>) src(%78 : memref<1x128xf32, #tpu.memory_space<any>>) dst(%79 : memref<1x128xf32, #tpu.memory_space<vmem>>)
    %c0_i32_54 = arith.constant 0 : i32
    %82 = arith.cmpi eq, %75, %c0_i32_54 : i32
    %83 = arith.extui %82 : i1 to i32
    %c0_i32_55 = arith.constant 0 : i32
    %84 = arith.cmpi ne, %83, %c0_i32_55 : i32
    scf.if %84 {
      %cst = arith.constant 0.000000e+00 : f32
      %169 = vector.broadcast %cst : f32 to vector<1x128xf32>
      %c0 = arith.constant 0 : index
      %c0_119 = arith.constant 0 : index
      %170 = vector.load %arg3[%c0, %c0_119] : memref<8x128xf32, #tpu.memory_space<vmem>>, vector<1x128xf32>
      tpu.vector_store %arg3[%c0, %c0_119], %169 {strides = array<i32>} : memref<8x128xf32, #tpu.memory_space<vmem>>, vector<1x128xf32>,
    } else {
    }
    %c1_i32_56 = arith.constant 1 : i32
    %85 = arith.addi %0, %c1_i32_56 : i32
    %86 = arith.index_cast %85 : i32 to index
    %87 = memref.load %arg1[%86] : memref<16xi32, #tpu.memory_space<smem>>
    %c0_i32_57 = arith.constant 0 : i32
    %88 = arith.maxsi %87, %c0_i32_57 : i32
    %c63_i32_58 = arith.constant 63 : i32
    %89 = arith.minsi %88, %c63_i32_58 : i32
    %c1_i32_59 = arith.constant 1 : i32
    %c0_i32_60 = arith.constant 0 : i32
    %90 = tpu.memref_slice %arg2[%89, %c0_i32_60] : memref<64x128xf32, #tpu.memory_space<any>> -> memref<1x128xf32, #tpu.memory_space<any>>
    %c1_i32_61 = arith.constant 1 : i32
    %c0_i32_62 = arith.constant 0 : i32
    %91 = tpu.memref_slice %arg3[%c1_i32_61, %c0_i32_62] : memref<8x128xf32, #tpu.memory_space<vmem>> -> memref<1x128xf32, #tpu.memory_space<vmem>>
    %92 = tpu.memref_slice %arg4[%c1_i32_59] : memref<8x!tpu.dma_semaphore, #tpu.memory_space<semaphore_mem>> -> memref<1x!tpu.dma_semaphore, #tpu.memory_space<semaphore_mem>>
    %93 = tpu.memref_squeeze %92 : memref<1x!tpu.dma_semaphore, #tpu.memory_space<semaphore_mem>> -> memref<!tpu.dma_semaphore, #tpu.memory_space<semaphore_mem>>
    tpu.wait_dma2 semaphore(%93 : memref<!tpu.dma_semaphore, #tpu.memory_space<semaphore_mem>>) src(%90 : memref<1x128xf32, #tpu.memory_space<any>>) dst(%91 : memref<1x128xf32, #tpu.memory_space<vmem>>)
    %c0_i32_63 = arith.constant 0 : i32
    %94 = arith.cmpi eq, %87, %c0_i32_63 : i32
    %95 = arith.extui %94 : i1 to i32
    %c0_i32_64 = arith.constant 0 : i32
    %96 = arith.cmpi ne, %95, %c0_i32_64 : i32
    scf.if %96 {
      %cst = arith.constant 0.000000e+00 : f32
      %169 = vector.broadcast %cst : f32 to vector<1x128xf32>
      %c1 = arith.constant 1 : index
      %c0 = arith.constant 0 : index
      %170 = vector.load %arg3[%c1, %c0] : memref<8x128xf32, #tpu.memory_space<vmem>>, vector<1x128xf32>
      tpu.vector_store %arg3[%c1, %c0], %169 {strides = array<i32>} : memref<8x128xf32, #tpu.memory_space<vmem>>, vector<1x128xf32>,
    } else {
    }
    %c2_i32_65 = arith.constant 2 : i32
    %97 = arith.addi %0, %c2_i32_65 : i32
    %98 = arith.index_cast %97 : i32 to index
    %99 = memref.load %arg1[%98] : memref<16xi32, #tpu.memory_space<smem>>
    %c0_i32_66 = arith.constant 0 : i32
    %100 = arith.maxsi %99, %c0_i32_66 : i32
    %c63_i32_67 = arith.constant 63 : i32
    %101 = arith.minsi %100, %c63_i32_67 : i32
    %c2_i32_68 = arith.constant 2 : i32
    %c0_i32_69 = arith.constant 0 : i32
    %102 = tpu.memref_slice %arg2[%101, %c0_i32_69] : memref<64x128xf32, #tpu.memory_space<any>> -> memref<1x128xf32, #tpu.memory_space<any>>
    %c2_i32_70 = arith.constant 2 : i32
    %c0_i32_71 = arith.constant 0 : i32
    %103 = tpu.memref_slice %arg3[%c2_i32_70, %c0_i32_71] : memref<8x128xf32, #tpu.memory_space<vmem>> -> memref<1x128xf32, #tpu.memory_space<vmem>>
    %104 = tpu.memref_slice %arg4[%c2_i32_68] : memref<8x!tpu.dma_semaphore, #tpu.memory_space<semaphore_mem>> -> memref<1x!tpu.dma_semaphore, #tpu.memory_space<semaphore_mem>>
    %105 = tpu.memref_squeeze %104 : memref<1x!tpu.dma_semaphore, #tpu.memory_space<semaphore_mem>> -> memref<!tpu.dma_semaphore, #tpu.memory_space<semaphore_mem>>
    tpu.wait_dma2 semaphore(%105 : memref<!tpu.dma_semaphore, #tpu.memory_space<semaphore_mem>>) src(%102 : memref<1x128xf32, #tpu.memory_space<any>>) dst(%103 : memref<1x128xf32, #tpu.memory_space<vmem>>)
    %c0_i32_72 = arith.constant 0 : i32
    %106 = arith.cmpi eq, %99, %c0_i32_72 : i32
    %107 = arith.extui %106 : i1 to i32
    %c0_i32_73 = arith.constant 0 : i32
    %108 = arith.cmpi ne, %107, %c0_i32_73 : i32
    scf.if %108 {
      %cst = arith.constant 0.000000e+00 : f32
      %169 = vector.broadcast %cst : f32 to vector<1x128xf32>
      %c2 = arith.constant 2 : index
      %c0 = arith.constant 0 : index
      %170 = vector.load %arg3[%c2, %c0] : memref<8x128xf32, #tpu.memory_space<vmem>>, vector<1x128xf32>
      tpu.vector_store %arg3[%c2, %c0], %169 {strides = array<i32>} : memref<8x128xf32, #tpu.memory_space<vmem>>, vector<1x128xf32>,
    } else {
    }
    %c3_i32_74 = arith.constant 3 : i32
    %109 = arith.addi %0, %c3_i32_74 : i32
    %110 = arith.index_cast %109 : i32 to index
    %111 = memref.load %arg1[%110] : memref<16xi32, #tpu.memory_space<smem>>
    %c0_i32_75 = arith.constant 0 : i32
    %112 = arith.maxsi %111, %c0_i32_75 : i32
    %c63_i32_76 = arith.constant 63 : i32
    %113 = arith.minsi %112, %c63_i32_76 : i32
    %c3_i32_77 = arith.constant 3 : i32
    %c0_i32_78 = arith.constant 0 : i32
    %114 = tpu.memref_slice %arg2[%113, %c0_i32_78] : memref<64x128xf32, #tpu.memory_space<any>> -> memref<1x128xf32, #tpu.memory_space<any>>
    %c3_i32_79 = arith.constant 3 : i32
    %c0_i32_80 = arith.constant 0 : i32
    %115 = tpu.memref_slice %arg3[%c3_i32_79, %c0_i32_80] : memref<8x128xf32, #tpu.memory_space<vmem>> -> memref<1x128xf32, #tpu.memory_space<vmem>>
    %116 = tpu.memref_slice %arg4[%c3_i32_77] : memref<8x!tpu.dma_semaphore, #tpu.memory_space<semaphore_mem>> -> memref<1x!tpu.dma_semaphore, #tpu.memory_space<semaphore_mem>>
    %117 = tpu.memref_squeeze %116 : memref<1x!tpu.dma_semaphore, #tpu.memory_space<semaphore_mem>> -> memref<!tpu.dma_semaphore, #tpu.memory_space<semaphore_mem>>
    tpu.wait_dma2 semaphore(%117 : memref<!tpu.dma_semaphore, #tpu.memory_space<semaphore_mem>>) src(%114 : memref<1x128xf32, #tpu.memory_space<any>>) dst(%115 : memref<1x128xf32, #tpu.memory_space<vmem>>)
    %c0_i32_81 = arith.constant 0 : i32
    %118 = arith.cmpi eq, %111, %c0_i32_81 : i32
    %119 = arith.extui %118 : i1 to i32
    %c0_i32_82 = arith.constant 0 : i32
    %120 = arith.cmpi ne, %119, %c0_i32_82 : i32
    scf.if %120 {
      %cst = arith.constant 0.000000e+00 : f32
      %169 = vector.broadcast %cst : f32 to vector<1x128xf32>
      %c3 = arith.constant 3 : index
      %c0 = arith.constant 0 : index
      %170 = vector.load %arg3[%c3, %c0] : memref<8x128xf32, #tpu.memory_space<vmem>>, vector<1x128xf32>
      tpu.vector_store %arg3[%c3, %c0], %169 {strides = array<i32>} : memref<8x128xf32, #tpu.memory_space<vmem>>, vector<1x128xf32>,
    } else {
    }
    %c4_i32_83 = arith.constant 4 : i32
    %121 = arith.addi %0, %c4_i32_83 : i32
    %122 = arith.index_cast %121 : i32 to index
    %123 = memref.load %arg1[%122] : memref<16xi32, #tpu.memory_space<smem>>
    %c0_i32_84 = arith.constant 0 : i32
    %124 = arith.maxsi %123, %c0_i32_84 : i32
    %c63_i32_85 = arith.constant 63 : i32
    %125 = arith.minsi %124, %c63_i32_85 : i32
    %c4_i32_86 = arith.constant 4 : i32
    %c0_i32_87 = arith.constant 0 : i32
    %126 = tpu.memref_slice %arg2[%125, %c0_i32_87] : memref<64x128xf32, #tpu.memory_space<any>> -> memref<1x128xf32, #tpu.memory_space<any>>
    %c4_i32_88 = arith.constant 4 : i32
    %c0_i32_89 = arith.constant 0 : i32
    %127 = tpu.memref_slice %arg3[%c4_i32_88, %c0_i32_89] : memref<8x128xf32, #tpu.memory_space<vmem>> -> memref<1x128xf32, #tpu.memory_space<vmem>>
    %128 = tpu.memref_slice %arg4[%c4_i32_86] : memref<8x!tpu.dma_semaphore, #tpu.memory_space<semaphore_mem>> -> memref<1x!tpu.dma_semaphore, #tpu.memory_space<semaphore_mem>>
    %129 = tpu.memref_squeeze %128 : memref<1x!tpu.dma_semaphore, #tpu.memory_space<semaphore_mem>> -> memref<!tpu.dma_semaphore, #tpu.memory_space<semaphore_mem>>
    tpu.wait_dma2 semaphore(%129 : memref<!tpu.dma_semaphore, #tpu.memory_space<semaphore_mem>>) src(%126 : memref<1x128xf32, #tpu.memory_space<any>>) dst(%127 : memref<1x128xf32, #tpu.memory_space<vmem>>)
    %c0_i32_90 = arith.constant 0 : i32
    %130 = arith.cmpi eq, %123, %c0_i32_90 : i32
    %131 = arith.extui %130 : i1 to i32
    %c0_i32_91 = arith.constant 0 : i32
    %132 = arith.cmpi ne, %131, %c0_i32_91 : i32
    scf.if %132 {
      %cst = arith.constant 0.000000e+00 : f32
      %169 = vector.broadcast %cst : f32 to vector<1x128xf32>
      %c4 = arith.constant 4 : index
      %c0 = arith.constant 0 : index
      %170 = vector.load %arg3[%c4, %c0] : memref<8x128xf32, #tpu.memory_space<vmem>>, vector<1x128xf32>
      tpu.vector_store %arg3[%c4, %c0], %169 {strides = array<i32>} : memref<8x128xf32, #tpu.memory_space<vmem>>, vector<1x128xf32>,
    } else {
    }
    %c5_i32_92 = arith.constant 5 : i32
    %133 = arith.addi %0, %c5_i32_92 : i32
    %134 = arith.index_cast %133 : i32 to index
    %135 = memref.load %arg1[%134] : memref<16xi32, #tpu.memory_space<smem>>
    %c0_i32_93 = arith.constant 0 : i32
    %136 = arith.maxsi %135, %c0_i32_93 : i32
    %c63_i32_94 = arith.constant 63 : i32
    %137 = arith.minsi %136, %c63_i32_94 : i32
    %c5_i32_95 = arith.constant 5 : i32
    %c0_i32_96 = arith.constant 0 : i32
    %138 = tpu.memref_slice %arg2[%137, %c0_i32_96] : memref<64x128xf32, #tpu.memory_space<any>> -> memref<1x128xf32, #tpu.memory_space<any>>
    %c5_i32_97 = arith.constant 5 : i32
    %c0_i32_98 = arith.constant 0 : i32
    %139 = tpu.memref_slice %arg3[%c5_i32_97, %c0_i32_98] : memref<8x128xf32, #tpu.memory_space<vmem>> -> memref<1x128xf32, #tpu.memory_space<vmem>>
    %140 = tpu.memref_slice %arg4[%c5_i32_95] : memref<8x!tpu.dma_semaphore, #tpu.memory_space<semaphore_mem>> -> memref<1x!tpu.dma_semaphore, #tpu.memory_space<semaphore_mem>>
    %141 = tpu.memref_squeeze %140 : memref<1x!tpu.dma_semaphore, #tpu.memory_space<semaphore_mem>> -> memref<!tpu.dma_semaphore, #tpu.memory_space<semaphore_mem>>
    tpu.wait_dma2 semaphore(%141 : memref<!tpu.dma_semaphore, #tpu.memory_space<semaphore_mem>>) src(%138 : memref<1x128xf32, #tpu.memory_space<any>>) dst(%139 : memref<1x128xf32, #tpu.memory_space<vmem>>)
    %c0_i32_99 = arith.constant 0 : i32
    %142 = arith.cmpi eq, %135, %c0_i32_99 : i32
    %143 = arith.extui %142 : i1 to i32
    %c0_i32_100 = arith.constant 0 : i32
    %144 = arith.cmpi ne, %143, %c0_i32_100 : i32
    scf.if %144 {
      %cst = arith.constant 0.000000e+00 : f32
      %169 = vector.broadcast %cst : f32 to vector<1x128xf32>
      %c5 = arith.constant 5 : index
      %c0 = arith.constant 0 : index
      %170 = vector.load %arg3[%c5, %c0] : memref<8x128xf32, #tpu.memory_space<vmem>>, vector<1x128xf32>
      tpu.vector_store %arg3[%c5, %c0], %169 {strides = array<i32>} : memref<8x128xf32, #tpu.memory_space<vmem>>, vector<1x128xf32>,
    } else {
    }
    %c6_i32_101 = arith.constant 6 : i32
    %145 = arith.addi %0, %c6_i32_101 : i32
    %146 = arith.index_cast %145 : i32 to index
    %147 = memref.load %arg1[%146] : memref<16xi32, #tpu.memory_space<smem>>
    %c0_i32_102 = arith.constant 0 : i32
    %148 = arith.maxsi %147, %c0_i32_102 : i32
    %c63_i32_103 = arith.constant 63 : i32
    %149 = arith.minsi %148, %c63_i32_103 : i32
    %c6_i32_104 = arith.constant 6 : i32
    %c0_i32_105 = arith.constant 0 : i32
    %150 = tpu.memref_slice %arg2[%149, %c0_i32_105] : memref<64x128xf32, #tpu.memory_space<any>> -> memref<1x128xf32, #tpu.memory_space<any>>
    %c6_i32_106 = arith.constant 6 : i32
    %c0_i32_107 = arith.constant 0 : i32
    %151 = tpu.memref_slice %arg3[%c6_i32_106, %c0_i32_107] : memref<8x128xf32, #tpu.memory_space<vmem>> -> memref<1x128xf32, #tpu.memory_space<vmem>>
    %152 = tpu.memref_slice %arg4[%c6_i32_104] : memref<8x!tpu.dma_semaphore, #tpu.memory_space<semaphore_mem>> -> memref<1x!tpu.dma_semaphore, #tpu.memory_space<semaphore_mem>>
    %153 = tpu.memref_squeeze %152 : memref<1x!tpu.dma_semaphore, #tpu.memory_space<semaphore_mem>> -> memref<!tpu.dma_semaphore, #tpu.memory_space<semaphore_mem>>
    tpu.wait_dma2 semaphore(%153 : memref<!tpu.dma_semaphore, #tpu.memory_space<semaphore_mem>>) src(%150 : memref<1x128xf32, #tpu.memory_space<any>>) dst(%151 : memref<1x128xf32, #tpu.memory_space<vmem>>)
    %c0_i32_108 = arith.constant 0 : i32
    %154 = arith.cmpi eq, %147, %c0_i32_108 : i32
    %155 = arith.extui %154 : i1 to i32
    %c0_i32_109 = arith.constant 0 : i32
    %156 = arith.cmpi ne, %155, %c0_i32_109 : i32
    scf.if %156 {
      %cst = arith.constant 0.000000e+00 : f32
      %169 = vector.broadcast %cst : f32 to vector<1x128xf32>
      %c6 = arith.constant 6 : index
      %c0 = arith.constant 0 : index
      %170 = vector.load %arg3[%c6, %c0] : memref<8x128xf32, #tpu.memory_space<vmem>>, vector<1x128xf32>
      tpu.vector_store %arg3[%c6, %c0], %169 {strides = array<i32>} : memref<8x128xf32, #tpu.memory_space<vmem>>, vector<1x128xf32>,
    } else {
    }
    %c7_i32_110 = arith.constant 7 : i32
    %157 = arith.addi %0, %c7_i32_110 : i32
    %158 = arith.index_cast %157 : i32 to index
    %159 = memref.load %arg1[%158] : memref<16xi32, #tpu.memory_space<smem>>
    %c0_i32_111 = arith.constant 0 : i32
    %160 = arith.maxsi %159, %c0_i32_111 : i32
    %c63_i32_112 = arith.constant 63 : i32
    %161 = arith.minsi %160, %c63_i32_112 : i32
    %c7_i32_113 = arith.constant 7 : i32
    %c0_i32_114 = arith.constant 0 : i32
    %162 = tpu.memref_slice %arg2[%161, %c0_i32_114] : memref<64x128xf32, #tpu.memory_space<any>> -> memref<1x128xf32, #tpu.memory_space<any>>
    %c7_i32_115 = arith.constant 7 : i32
    %c0_i32_116 = arith.constant 0 : i32
    %163 = tpu.memref_slice %arg3[%c7_i32_115, %c0_i32_116] : memref<8x128xf32, #tpu.memory_space<vmem>> -> memref<1x128xf32, #tpu.memory_space<vmem>>
    %164 = tpu.memref_slice %arg4[%c7_i32_113] : memref<8x!tpu.dma_semaphore, #tpu.memory_space<semaphore_mem>> -> memref<1x!tpu.dma_semaphore, #tpu.memory_space<semaphore_mem>>
    %165 = tpu.memref_squeeze %164 : memref<1x!tpu.dma_semaphore, #tpu.memory_space<semaphore_mem>> -> memref<!tpu.dma_semaphore, #tpu.memory_space<semaphore_mem>>
    tpu.wait_dma2 semaphore(%165 : memref<!tpu.dma_semaphore, #tpu.memory_space<semaphore_mem>>) src(%162 : memref<1x128xf32, #tpu.memory_space<any>>) dst(%163 : memref<1x128xf32, #tpu.memory_space<vmem>>)
    %c0_i32_117 = arith.constant 0 : i32
    %166 = arith.cmpi eq, %159, %c0_i32_117 : i32
    %167 = arith.extui %166 : i1 to i32
    %c0_i32_118 = arith.constant 0 : i32
    %168 = arith.cmpi ne, %167, %c0_i32_118 : i32
    scf.if %168 {
      %cst = arith.constant 0.000000e+00 : f32
      %169 = vector.broadcast %cst : f32 to vector<1x128xf32>
      %c7 = arith.constant 7 : index
      %c0 = arith.constant 0 : index
      %170 = vector.load %arg3[%c7, %c0] : memref<8x128xf32, #tpu.memory_space<vmem>>, vector<1x128xf32>
      tpu.vector_store %arg3[%c7, %c0], %169 {strides = array<i32>} : memref<8x128xf32, #tpu.memory_space<vmem>>, vector<1x128xf32>,
    } else {
    }
    return
  }
  func.func @transform_1(%arg0: i32, %arg1: memref<16xi32, #tpu.memory_space<smem>>) -> (i32, i32) {
    %c0_i32 = arith.constant 0 : i32
    %c0_i32_0 = arith.constant 0 : i32
    return %arg0, %c0_i32 : i32, i32
  }
}

</mosaic_0001>

<llo_original>
// kernel: tpu_custom_call.1
$region0: #{tpu_custom_call.1}
  #allocation0 [shape = 'u32[]', space=smem, size = 0x4, offset = 0x4, fixed_abs, tag = 'smem constant byte address 0x4 - core index']
  #allocation1 [shape = 'u32[144,128]{1,0:T(1,128)}', space=vmem, size = 0x12000, scoped, tag = 'internal scratch']
  #allocation2 [shape = 's32[8]{0}', space=sflag, size = 0x20, scoped, tag = 'scratch operand']
  #allocation3 [shape = 's32[1]{0}', space=sflag, size = 0x4, scoped, tag = 'scoped memory for tpu_custom_call.1']
  #allocation4 [shape = 'u8[512]{0}', space=smem, size = 0x200, scoped, tag = 'prefetched SMEM operand 0']
  #allocation7 [shape = 's32[]', space=sflag, size = 0x4, offset = 0, fixed_abs, tag = 'sflag constant byte address 0x0 - dummy sync flag']
  #allocation8 [shape = 's32[]', space=sflag, size = 0x4, offset = 0, fixed_abs, tag = 'sflag constant byte address 0x0 - dummy sync flag']
  #allocation9 [shape = 'u32[]', space=smem, size = 0x4, offset = 0x44, fixed_abs, tag = 'smem constant byte address 0x44 - assertion arg 0']
  #allocation10 [shape = 'u32[]', space=smem, size = 0x4, offset = 0x48, fixed_abs, tag = 'smem constant byte address 0x48 - assertion arg 1']
  #allocation11 [shape = 's32[]', space=sflag, size = 0x4, offset = 0, fixed_abs, tag = 'sflag constant byte address 0x0 - dummy sync flag']
  #allocation12 [shape = 's32[]', space=sflag, size = 0x4, offset = 0, fixed_abs, tag = 'sflag constant byte address 0x0 - dummy sync flag']
  #allocation13 [shape = 's32[]', space=sflag, size = 0x4, offset = 0, fixed_abs, tag = 'sflag constant byte address 0x0 - dummy sync flag']
  #allocation14 [shape = 's32[]', space=sflag, size = 0x4, offset = 0, fixed_abs, tag = 'sflag constant byte address 0x0 - dummy sync flag']
  #allocation15 [shape = 's32[]', space=sflag, size = 0x4, offset = 0, fixed_abs, tag = 'sflag constant byte address 0x0 - dummy sync flag']
  #allocation16 [shape = 's32[]', space=sflag, size = 0x4, offset = 0, fixed_abs, tag = 'sflag constant byte address 0x0 - dummy sync flag']
  #allocation17 [shape = 's32[]', space=sflag, size = 0x4, offset = 0, fixed_abs, tag = 'sflag constant byte address 0x0 - dummy sync flag']
  #allocation18 [shape = 's32[]', space=sflag, size = 0x4, offset = 0, fixed_abs, tag = 'sflag constant byte address 0x0 - dummy sync flag']
  #allocation19 [shape = 's32[]', space=sflag, size = 0x4, offset = 0, fixed_abs, tag = 'sflag constant byte address 0x0 - dummy sync flag']
  #allocation20 [shape = 's32[]', space=sflag, size = 0x4, offset = 0, fixed_abs, tag = 'sflag constant byte address 0x0 - dummy sync flag']
  #allocation21 [shape = 's32[]', space=sflag, size = 0x4, offset = 0, fixed_abs, tag = 'sflag constant byte address 0x0 - dummy sync flag']
  #allocation22 [shape = 's32[]', space=sflag, size = 0x4, offset = 0, fixed_abs, tag = 'sflag constant byte address 0x0 - dummy sync flag']
  #allocation23 [shape = 's32[]', space=sflag, size = 0x4, offset = 0, fixed_abs, tag = 'sflag constant byte address 0x0 - dummy sync flag']
  #allocation24 [shape = 's32[]', space=sflag, size = 0x4, offset = 0, fixed_abs, tag = 'sflag constant byte address 0x0 - dummy sync flag']
  %s0 = inlined_call_operand.hbm [shape: s32[16], index: 0, kind: input, shape index: {}]
  %s1 = inlined_call_operand.hbm [shape: f32[64,128], index: 1, kind: input, shape index: {}]
  %s2 = inlined_call_operand.hbm [shape: f32[16,128], index: 2, kind: output, shape index: {}]
  %s3 = sld [smem:[#allocation0]]
  $region89: #{tpu_custom_call.1} parent=0
    _
  %s5 = ssub.s32 1, %s3
  %s6 = scalar_select 0, %s5, %s3
  %8 = dma.hbm_to_smem %s0, 16, [#allocation4], [#allocation3]
  %9 = dma.done [#allocation3], 16
  %10 = sfence
  $region1: #{tpu_custom_call.1} parent=0
    #allocation5 [shape = 'u8[8192]{0}', space=vmem, size = 0x2000, scoped, tag = 'output window, operand 0']
    #allocation6 [shape = 's32[2]{0}', space=sflag, size = 0x8, scoped, tag = 'scoped memory for tpu_custom_call.1']
    %11 = vsyncpa [#allocation6], 0
    %s12 = scalar_lea.sflag [#allocation6], 1
    %13 = vsyncpa %s12, 0
    loop: start=0, step=1, limit=3
    $region2: #{tpu_custom_call.1} parent=1 // loop_pre_header
      _
    $region3: #{tpu_custom_call.1} parent=1 // loop_header
      %s15 = sphi 0, %s19
      %p16 = scmp.ge.s32.totalorder %s15, 3
      %s24 = sphi 0, %s26
      %s27 = sphi 0, %s24
      %s37 = sphi 0, %s27
    $region4: #{tpu_custom_call.1} parent=1 // loop_header_branch
      %18 = sbr.rel (%p16) target = $region8
    $region5: #{tpu_custom_call.1} parent=1 // loop_body
      %s20 = ssub.s32 %s15, 1
      %s21 = sadd.s32 %s15, 1
      %s22 = ssub.s32 %s15, %s21
      %p23 = scmp.eq.s32.totalorder %s22, 0
      %s25 = sadd.s32 %s24, 1
      %s26 = scalar_select %p23, %s24, %s25
      %p28 = pneg %p23
      %p29 = scmp.eq.s32.totalorder %s15, 1
      %p30 = por %p28, %p29
      %p31 = scmp.ne.s32.totalorder %s24, %s27
      %p32 = scmp.eq.s32.totalorder %s15, 0
      %p33 = por %p31, %p32
      %p34 = scmp.ne.s32.totalorder %s24, %s27
      %p35 = scmp.eq.s32.totalorder %s20, 1
      %p36 = por %p34, %p35
      %p38 = scmp.ne.s32.totalorder %s27, %s37
      %p39 = scmp.eq.s32.totalorder %s20, 0
      %p40 = por %p38, %p39
      %p41 = scmp.lt.s32.totalorder %s15, 2
      // Predicated region
      $region9: #{tpu_custom_call.1} parent=5 // pred_check
        %p42 = pneg %p41
      $region10: #{tpu_custom_call.1} parent=5 // pred_check_branch
        %44 = sbr.rel (%p42) target = $region12
      $region11: #{tpu_custom_call.1} parent=5 // pred_region
        %p45 = pneg %p33
        %p46 = pneg %p30
        %s47 = sand.u32 %s24, 1
        %s48 = scalar_lea.sflag [#allocation6], %s47
        %s49 = sand.u32 %s24, 1
        %s50 = smul.addr %s49, 8
        %s51 = scalar_lea.vmem [#allocation5], %s50
        %s52 = smul.u32 %s15, 8
        %s53 = sld [smem:[#allocation4 + %s52]]
        %p54 = scmp.gt.s32.totalorder %s53, 0
        %s55 = scalar_select %p54, %s53, 0
        %p56 = scmp.lt.s32.totalorder %s55, 63
        %s57 = scalar_select %p56, %s55, 63
        %s58 = smul.addr %s57, 16
        %s59 = scalar_lea.hbm %s1, %s58
        // Predicated region
        $region13: #{tpu_custom_call.1} parent=11 // pred_check
          _
        $region14: #{tpu_custom_call.1} parent=11 // pred_check_branch
          %61 = sbr.rel target = $region16
        $region15: #{tpu_custom_call.1} parent=11 // pred_region
          %62 = sst [smem:[#allocation9]] [#allocation8]
          %63 = sst [smem:[#allocation10]] [#allocation7]
        $region16: #{tpu_custom_call.1} parent=11 // pred_fallthru
          _
        %65 = shalt.err (0)
        %s67 = sshll.u32 %s51, 4
        %s68 = int_to_ptr.vmem [resolvable:$true] %s67
        %70 = dma.hbm_to_vmem [thread:$0]  %s59, 16, %s68, [#allocation2]
        %s71 = sadd.s32 %s52, 1
        %s72 = sld [smem:[#allocation4 + %s71]]
        %p73 = scmp.gt.s32.totalorder %s72, 0
        %s74 = scalar_select %p73, %s72, 0
        %p75 = scmp.lt.s32.totalorder %s74, 63
        %s76 = scalar_select %p75, %s74, 63
        %s77 = smul.addr %s76, 16
        %s78 = scalar_lea.hbm %s1, %s77
        %s79 = scalar_lea.vmem %s51, 1 [#allocation5]
        %s80 = scalar_lea.sflag [#allocation2], 1
        // Predicated region
        $region17: #{tpu_custom_call.1} parent=11 // pred_check
          _
        $region18: #{tpu_custom_call.1} parent=11 // pred_check_branch
          %82 = sbr.rel target = $region20
        $region19: #{tpu_custom_call.1} parent=11 // pred_region
          %83 = sst [smem:[#allocation9]] [#allocation12]
          %84 = sst [smem:[#allocation10]] [#allocation11]
        $region20: #{tpu_custom_call.1} parent=11 // pred_fallthru
          _
        %86 = shalt.err (0)
        %s88 = sshll.u32 %s79, 4
        %s89 = int_to_ptr.vmem [resolvable:$true] %s88
        %91 = dma.hbm_to_vmem [thread:$0]  %s78, 16, %s89, %s80
        %s92 = sadd.s32 %s52, 2
        %s93 = sld [smem:[#allocation4 + %s92]]
        %p94 = scmp.gt.s32.totalorder %s93, 0
        %s95 = scalar_select %p94, %s93, 0
        %p96 = scmp.lt.s32.totalorder %s95, 63
        %s97 = scalar_select %p96, %s95, 63
        %s98 = smul.addr %s97, 16
        %s99 = scalar_lea.hbm %s1, %s98
        %s100 = scalar_lea.vmem %s51, 2 [#allocation5]
        %s101 = scalar_lea.sflag [#allocation2], 2
        // Predicated region
        $region21: #{tpu_custom_call.1} parent=11 // pred_check
          _
        $region22: #{tpu_custom_call.1} parent=11 // pred_check_branch
          %103 = sbr.rel target = $region24
        $region23: #{tpu_custom_call.1} parent=11 // pred_region
          %104 = sst [smem:[#allocation9]] [#allocation14]
          %105 = sst [smem:[#allocation10]] [#allocation13]
        $region24: #{tpu_custom_call.1} parent=11 // pred_fallthru
          _
        %107 = shalt.err (0)
        %s109 = sshll.u32 %s100, 4
        %s110 = int_to_ptr.vmem [resolvable:$true] %s109
        %112 = dma.hbm_to_vmem [thread:$0]  %s99, 16, %s110, %s101
        %s113 = sadd.s32 %s52, 3
        %s114 = sld [smem:[#allocation4 + %s113]]
        %p115 = scmp.gt.s32.totalorder %s114, 0
        %s116 = scalar_select %p115, %s114, 0
        %p117 = scmp.lt.s32.totalorder %s116, 63
        %s118 = scalar_select %p117, %s116, 63
        %s119 = smul.addr %s118, 16
        %s120 = scalar_lea.hbm %s1, %s119
        %s121 = scalar_lea.vmem %s51, 3 [#allocation5]
        %s122 = scalar_lea.sflag [#allocation2], 3
        // Predicated region
        $region25: #{tpu_custom_call.1} parent=11 // pred_check
          _
        $region26: #{tpu_custom_call.1} parent=11 // pred_check_branch
          %124 = sbr.rel target = $region28
        $region27: #{tpu_custom_call.1} parent=11 // pred_region
          %125 = sst [smem:[#allocation9]] [#allocation16]
          %126 = sst [smem:[#allocation10]] [#allocation15]
        $region28: #{tpu_custom_call.1} parent=11 // pred_fallthru
          _
        %128 = shalt.err (0)
        %s130 = sshll.u32 %s121, 4
        %s131 = int_to_ptr.vmem [resolvable:$true] %s130
        %133 = dma.hbm_to_vmem [thread:$0]  %s120, 16, %s131, %s122
        %s134 = sadd.s32 %s52, 4
        %s135 = sld [smem:[#allocation4 + %s134]]
        %p136 = scmp.gt.s32.totalorder %s135, 0
        %s137 = scalar_select %p136, %s135, 0
        %p138 = scmp.lt.s32.totalorder %s137, 63
        %s139 = scalar_select %p138, %s137, 63
        %s140 = smul.addr %s139, 16
        %s141 = scalar_lea.hbm %s1, %s140
        %s142 = scalar_lea.vmem %s51, 4 [#allocation5]
        %s143 = scalar_lea.sflag [#allocation2], 4
        // Predicated region
        $region29: #{tpu_custom_call.1} parent=11 // pred_check
          _
        $region30: #{tpu_custom_call.1} parent=11 // pred_check_branch
          %145 = sbr.rel target = $region32
        $region31: #{tpu_custom_call.1} parent=11 // pred_region
          %146 = sst [smem:[#allocation9]] [#allocation18]
          %147 = sst [smem:[#allocation10]] [#allocation17]
        $region32: #{tpu_custom_call.1} parent=11 // pred_fallthru
          _
        %149 = shalt.err (0)
        %s151 = sshll.u32 %s142, 4
        %s152 = int_to_ptr.vmem [resolvable:$true] %s151
        %154 = dma.hbm_to_vmem [thread:$0]  %s141, 16, %s152, %s143
        %s155 = sadd.s32 %s52, 5
        %s156 = sld [smem:[#allocation4 + %s155]]
        %p157 = scmp.gt.s32.totalorder %s156, 0
        %s158 = scalar_select %p157, %s156, 0
        %p159 = scmp.lt.s32.totalorder %s158, 63
        %s160 = scalar_select %p159, %s158, 63
        %s161 = smul.addr %s160, 16
        %s162 = scalar_lea.hbm %s1, %s161
        %s163 = scalar_lea.vmem %s51, 5 [#allocation5]
        %s164 = scalar_lea.sflag [#allocation2], 5
        // Predicated region
        $region33: #{tpu_custom_call.1} parent=11 // pred_check
          _
        $region34: #{tpu_custom_call.1} parent=11 // pred_check_branch
          %166 = sbr.rel target = $region36
        $region35: #{tpu_custom_call.1} parent=11 // pred_region
          %167 = sst [smem:[#allocation9]] [#allocation20]
          %168 = sst [smem:[#allocation10]] [#allocation19]
        $region36: #{tpu_custom_call.1} parent=11 // pred_fallthru
          _
        %170 = shalt.err (0)
        %s172 = sshll.u32 %s163, 4
        %s173 = int_to_ptr.vmem [resolvable:$true] %s172
        %175 = dma.hbm_to_vmem [thread:$0]  %s162, 16, %s173, %s164
        %s176 = sadd.s32 %s52, 6
        %s177 = sld [smem:[#allocation4 + %s176]]
        %p178 = scmp.gt.s32.totalorder %s177, 0
        %s179 = scalar_select %p178, %s177, 0
        %p180 = scmp.lt.s32.totalorder %s179, 63
        %s181 = scalar_select %p180, %s179, 63
        %s182 = smul.addr %s181, 16
        %s183 = scalar_lea.hbm %s1, %s182
        %s184 = scalar_lea.vmem %s51, 6 [#allocation5]
        %s185 = scalar_lea.sflag [#allocation2], 6
        // Predicated region
        $region37: #{tpu_custom_call.1} parent=11 // pred_check
          _
        $region38: #{tpu_custom_call.1} parent=11 // pred_check_branch
          %187 = sbr.rel target = $region40
        $region39: #{tpu_custom_call.1} parent=11 // pred_region
          %188 = sst [smem:[#allocation9]] [#allocation22]
          %189 = sst [smem:[#allocation10]] [#allocation21]
        $region40: #{tpu_custom_call.1} parent=11 // pred_fallthru
          _
        %191 = shalt.err (0)
        %s193 = sshll.u32 %s184, 4
        %s194 = int_to_ptr.vmem [resolvable:$true] %s193
        %196 = dma.hbm_to_vmem [thread:$0]  %s183, 16, %s194, %s185
        %s197 = sadd.s32 %s52, 7
        %s198 = sld [smem:[#allocation4 + %s197]]
        %p199 = scmp.gt.s32.totalorder %s198, 0
        %s200 = scalar_select %p199, %s198, 0
        %p201 = scmp.lt.s32.totalorder %s200, 63
        %s202 = scalar_select %p201, %s200, 63
        %s203 = smul.addr %s202, 16
        %s204 = scalar_lea.hbm %s1, %s203
        %s205 = scalar_lea.vmem %s51, 7 [#allocation5]
        %s206 = scalar_lea.sflag [#allocation2], 7
        // Predicated region
        $region41: #{tpu_custom_call.1} parent=11 // pred_check
          _
        $region42: #{tpu_custom_call.1} parent=11 // pred_check_branch
          %208 = sbr.rel target = $region44
        $region43: #{tpu_custom_call.1} parent=11 // pred_region
          %209 = sst [smem:[#allocation9]] [#allocation24]
          %210 = sst [smem:[#allocation10]] [#allocation23]
        $region44: #{tpu_custom_call.1} parent=11 // pred_fallthru
          _
        %212 = shalt.err (0)
        %s214 = sshll.u32 %s205, 4
        %s215 = int_to_ptr.vmem [resolvable:$true] %s214
        %217 = dma.hbm_to_vmem [thread:$0]  %s204, 16, %s215, %s206
        %s218 = sld [smem:[#allocation4 + %s52]]
        %s219 = smul.u32 1, 1
        %s220 = sshll.u32 %s219, 4
        %221 = dma.done [#allocation2], %s220
        %p222 = scmp.eq.s32.totalorder %s218, 0
        // Predicated region
        $region45: #{tpu_custom_call.1} parent=11 // pred_check
          %p223 = pneg %p222
        $region46: #{tpu_custom_call.1} parent=11 // pred_check_branch
          %225 = sbr.rel (%p223) target = $region48
        $region47: #{tpu_custom_call.1} parent=11 // pred_region
          %226 = vst [vmem:[%s51] sm:$0x1] 0.0
        $region48: #{tpu_custom_call.1} parent=11 // pred_fallthru
          _
        %s227 = sld [smem:[#allocation4 + %s71]]
        %s228 = sshll.u32 %s219, 4
        %229 = dma.done %s80, %s228
        %p230 = scmp.eq.s32.totalorder %s227, 0
        // Predicated region
        $region49: #{tpu_custom_call.1} parent=11 // pred_check
          %p231 = pneg %p230
        $region50: #{tpu_custom_call.1} parent=11 // pred_check_branch
          %233 = sbr.rel (%p231) target = $region52
        $region51: #{tpu_custom_call.1} parent=11 // pred_region
          %234 = vst [vmem:[%s51 + $0x1] sm:$0x1] 0.0
        $region52: #{tpu_custom_call.1} parent=11 // pred_fallthru
          _
        %s235 = sld [smem:[#allocation4 + %s92]]
        %s236 = sshll.u32 %s219, 4
        %237 = dma.done %s101, %s236
        %p238 = scmp.eq.s32.totalorder %s235, 0
        // Predicated region
        $region53: #{tpu_custom_call.1} parent=11 // pred_check
          %p239 = pneg %p238
        $region54: #{tpu_custom_call.1} parent=11 // pred_check_branch
          %241 = sbr.rel (%p239) target = $region56
        $region55: #{tpu_custom_call.1} parent=11 // pred_region
          %242 = vst [vmem:[%s51 + $0x2] sm:$0x1] 0.0
        $region56: #{tpu_custom_call.1} parent=11 // pred_fallthru
          _
        %s243 = sld [smem:[#allocation4 + %s113]]
        %s244 = sshll.u32 %s219, 4
        %245 = dma.done %s122, %s244
        %p246 = scmp.eq.s32.totalorder %s243, 0
        // Predicated region
        $region57: #{tpu_custom_call.1} parent=11 // pred_check
          %p247 = pneg %p246
        $region58: #{tpu_custom_call.1} parent=11 // pred_check_branch
          %249 = sbr.rel (%p247) target = $region60
        $region59: #{tpu_custom_call.1} parent=11 // pred_region
          %250 = vst [vmem:[%s51 + $0x3] sm:$0x1] 0.0
        $region60: #{tpu_custom_call.1} parent=11 // pred_fallthru
          _
        %s251 = sld [smem:[#allocation4 + %s134]]
        %s252 = sshll.u32 %s219, 4
        %253 = dma.done %s143, %s252
        %p254 = scmp.eq.s32.totalorder %s251, 0
        // Predicated region
        $region61: #{tpu_custom_call.1} parent=11 // pred_check
          %p255 = pneg %p254
        $region62: #{tpu_custom_call.1} parent=11 // pred_check_branch
          %257 = sbr.rel (%p255) target = $region64
        $region63: #{tpu_custom_call.1} parent=11 // pred_region
          %258 = vst [vmem:[%s51 + $0x4] sm:$0x1] 0.0
        $region64: #{tpu_custom_call.1} parent=11 // pred_fallthru
          _
        %s259 = sld [smem:[#allocation4 + %s155]]
        %s260 = sshll.u32 %s219, 4
        %261 = dma.done %s164, %s260
        %p262 = scmp.eq.s32.totalorder %s259, 0
        // Predicated region
        $region65: #{tpu_custom_call.1} parent=11 // pred_check
          %p263 = pneg %p262
        $region66: #{tpu_custom_call.1} parent=11 // pred_check_branch
          %265 = sbr.rel (%p263) target = $region68
        $region67: #{tpu_custom_call.1} parent=11 // pred_region
          %266 = vst [vmem:[%s51 + $0x5] sm:$0x1] 0.0
        $region68: #{tpu_custom_call.1} parent=11 // pred_fallthru
          _
        %s267 = sld [smem:[#allocation4 + %s176]]
        %s268 = sshll.u32 %s219, 4
        %269 = dma.done %s185, %s268
        %p270 = scmp.eq.s32.totalorder %s267, 0
        // Predicated region
        $region69: #{tpu_custom_call.1} parent=11 // pred_check
          %p271 = pneg %p270
        $region70: #{tpu_custom_call.1} parent=11 // pred_check_branch
          %273 = sbr.rel (%p271) target = $region72
        $region71: #{tpu_custom_call.1} parent=11 // pred_region
          %274 = vst [vmem:[%s51 + $0x6] sm:$0x1] 0.0
        $region72: #{tpu_custom_call.1} parent=11 // pred_fallthru
          _
        %s275 = sld [smem:[#allocation4 + %s197]]
        %s276 = sshll.u32 %s219, 4
        %277 = dma.done %s206, %s276
        %p278 = scmp.eq.s32.totalorder %s275, 0
        // Predicated region
        $region73: #{tpu_custom_call.1} parent=11 // pred_check
          %p279 = pneg %p278
        $region74: #{tpu_custom_call.1} parent=11 // pred_check_branch
          %281 = sbr.rel (%p279) target = $region76
        $region75: #{tpu_custom_call.1} parent=11 // pred_region
          %282 = vst [vmem:[%s51 + $0x7] sm:$0x1] 0.0
        $region76: #{tpu_custom_call.1} parent=11 // pred_fallthru
          _
        %s283 = sand.u32 %s24, 1
        %s284 = scalar_lea.sflag [#allocation6], %s283
        %s285 = sand.u32 %s24, 1
        %s286 = smul.addr %s285, 8
        %s287 = scalar_lea.vmem [#allocation5], %s286
        // Predicated region
        $region77: #{tpu_custom_call.1} parent=11 // pred_check
          %p288 = pneg %p30
        $region78: #{tpu_custom_call.1} parent=11 // pred_check_branch
          %290 = sbr.rel (%p288) target = $region80
        $region79: #{tpu_custom_call.1} parent=11 // pred_region
          %s292 = ssub.s32 128, 128
          %293 = vsyncadd %s284, %s292
          %s294 = smul.addr %s15, 128
          %s295 = scalar_lea.hbm %s2, %s294
          %s297 = sshll.u32 %s287, 4
          %s298 = int_to_ptr.vmem [resolvable:$true] %s297
          %300 = dma.vmem_to_hbm [thread:$0]  %s298, 128, %s295, %s284
        $region80: #{tpu_custom_call.1} parent=11 // pred_fallthru
          _
      $region12: #{tpu_custom_call.1} parent=5 // pred_fallthru
        _
      %p301 = scmp.le.s32.totalorder 1, %s15
      // Predicated region
      $region81: #{tpu_custom_call.1} parent=5 // pred_check
        %p302 = pneg %p301
      $region82: #{tpu_custom_call.1} parent=5 // pred_check_branch
        %304 = sbr.rel (%p302) target = $region84
      $region83: #{tpu_custom_call.1} parent=5 // pred_region
        %s305 = ssub.s32 %s15, 1
        // Predicated region
        $region85: #{tpu_custom_call.1} parent=83 // pred_check
          %p306 = pneg %p36
        $region86: #{tpu_custom_call.1} parent=83 // pred_check_branch
          %308 = sbr.rel (%p306) target = $region88
        $region87: #{tpu_custom_call.1} parent=83 // pred_region
          %s309 = sand.u32 %s27, 1
          %s310 = scalar_lea.sflag [#allocation6], %s309
          %s311 = sand.u32 %s27, 1
          %s312 = smul.addr %s311, 8
          %s313 = scalar_lea.vmem [#allocation5], %s312
          %314 = dma.done %s310, 128
        $region88: #{tpu_custom_call.1} parent=83 // pred_fallthru
          _
      $region84: #{tpu_custom_call.1} parent=5 // pred_fallthru
        _
    $region6: #{tpu_custom_call.1} parent=1 // loop_footer
      %s19 = sadd.s32 1, %s15
    $region7: #{tpu_custom_call.1} parent=1 // loop_footer_branch
      %14 = sbr.rel target = $region3
    $region8: #{tpu_custom_call.1} parent=1 // loop_exit
      _
    %315 = vsyncpa [#allocation6], 1
    %s316 = scalar_lea.sflag [#allocation6], 1
    %317 = vsyncpa %s316, 1
  %318 = vsyncmov [#allocation2]
  %s319 = vpop.sfrf %318
  %p320 = scmp.eq.s32.totalorder %s319, 0
  %p321 = pneg %p320
  %323 = shalt.err (%p321)
  %s324 = scalar_lea.sflag [#allocation2], 1
  %325 = vsyncmov %s324
  %s326 = vpop.sfrf %325
  %p327 = scmp.eq.s32.totalorder %s326, 0
  %p328 = pneg %p327
  %330 = shalt.err (%p328)
  %s331 = scalar_lea.sflag [#allocation2], 2
  %332 = vsyncmov %s331
  %s333 = vpop.sfrf %332
  %p334 = scmp.eq.s32.totalorder %s333, 0
  %p335 = pneg %p334
  %337 = shalt.err (%p335)
  %s338 = scalar_lea.sflag [#allocation2], 3
  %339 = vsyncmov %s338
  %s340 = vpop.sfrf %339
  %p341 = scmp.eq.s32.totalorder %s340, 0
  %p342 = pneg %p341
  %344 = shalt.err (%p342)
  %s345 = scalar_lea.sflag [#allocation2], 4
  %346 = vsyncmov %s345
  %s347 = vpop.sfrf %346
  %p348 = scmp.eq.s32.totalorder %s347, 0
  %p349 = pneg %p348
  %351 = shalt.err (%p349)
  %s352 = scalar_lea.sflag [#allocation2], 5
  %353 = vsyncmov %s352
  %s354 = vpop.sfrf %353
  %p355 = scmp.eq.s32.totalorder %s354, 0
  %p356 = pneg %p355
  %358 = shalt.err (%p356)
  %s359 = scalar_lea.sflag [#allocation2], 6
  %360 = vsyncmov %s359
  %s361 = vpop.sfrf %360
  %p362 = scmp.eq.s32.totalorder %s361, 0
  %p363 = pneg %p362
  %365 = shalt.err (%p363)
  %s366 = scalar_lea.sflag [#allocation2], 7
  %367 = vsyncmov %s366
  %s368 = vpop.sfrf %367
  %p369 = scmp.eq.s32.totalorder %s368, 0
  %p370 = pneg %p369
  %372 = shalt.err (%p370)

</llo_original>
